<compile_context>
chip_gen: v5e
topology: v5e:2x2
jax: 0.10.0
libtpu: 0.0.40
codegen_flags: <defaults>
</compile_context>

<pallas_src>
import functools

import jax
import jax.numpy as jnp
from jax import lax
from jax.experimental import pallas as pl
from jax.experimental.pallas import tpu as pltpu


def _yolo_loss_kernel(pred_ref, tgt_ref, out_ref, *, S, B, C,
                      lambda_coord, lambda_noobj, slabs):
    """One grid step = one lane-dense tile of (tile_rows, 128) grid cells.

    pred_ref : (5*B+C, tile_rows, 128)  channel-major, cells on (sublane, lane)
    tgt_ref  : (5+C,   tile_rows, 128)
    out_ref  : (1, 8, 128)              per-tile lane-dense partial loss sum
    """
    f32 = jnp.float32
    inv_S = 1.0 / float(S)

    def slab_loss(r0):
        # One 8-row sublane slab: every temporary below is exactly one vreg,
        # keeping total live values well under the 64-vreg file.
        def pch(k):  # one pred channel, (8, 128)
            return pred_ref[k, pl.ds(r0, 8), :].astype(f32)

        def tch(k):  # one target channel, (8, 128)
            return tgt_ref[k, pl.ds(r0, 8), :].astype(f32)

        tconf = tch(0)
        obj_b = tconf == 1.0
        obj = obj_b.astype(f32)
        noobj = (tconf == 0.0).astype(f32)   # zero-padded cells land here, but
                                             # their pred confs are 0 -> 0 loss

        # IoU is translation-invariant inside a cell: the (gx + x)/S offset of
        # the original corner formula cancels in every min/max difference and
        # every area, so use cell-relative corners (no gx/gy stream needed).
        def corners(x, y, w, h):
            xc = x * inv_S
            yc = y * inv_S
            hw = 0.5 * w
            hh = 0.5 * h
            return xc - hw, yc - hh, xc + hw, yc + hh

        tx, ty, tw, th = tch(1), tch(2), tch(3), tch(4)
        tx1, ty1, tx2, ty2 = corners(tx, ty, tw, th)
        t_area = tw * th

        noobj_conf_sq = None
        best_inter = best_union = None
        rc = rx = ry = rw = rh = None
        for b in range(B):
            base = 5 * b
            pc, px, py = pch(base + 0), pch(base + 1), pch(base + 2)
            pw, ph = pch(base + 3), pch(base + 4)

            csq = pc * pc                    # confidences live at stride 5
            noobj_conf_sq = csq if noobj_conf_sq is None else noobj_conf_sq + csq

            px1, py1, px2, py2 = corners(px, py, pw, ph)
            p_area = pw * ph
            iw = jnp.maximum(jnp.minimum(px2, tx2) - jnp.maximum(px1, tx1), 0.0)
            ih = jnp.maximum(jnp.minimum(py2, ty2) - jnp.maximum(py1, ty1), 0.0)
            inter = iw * ih
            union = p_area + t_area - inter

            if b == 0:
                best_inter, best_union = inter, union
                rc, rx, ry, rw, rh = pc, px, py, pw, ph
            else:
                # iou_b > best_iou  <=>  inter_b*best_union > best_inter*union_b
                # (unions positive for valid boxes): argmax without any divide.
                # Strict ">" keeps the earlier box on ties, like torch.max.
                better = inter * best_union > best_inter * union
                best_inter = jnp.where(better, inter, best_inter)
                best_union = jnp.where(better, union, best_union)
                rc = jnp.where(better, pc, rc)
                rx = jnp.where(better, px, rx)
                ry = jnp.where(better, py, ry)
                rw = jnp.where(better, pw, rw)
                rh = jnp.where(better, ph, rh)

        # One masked approx-EUP reciprocal per cell for the winning IoU;
        # noobj / padded cells never see a zero denominator.
        safe_union = jnp.where(obj_b, best_union, 1.0)
        best_iou = best_inter * pl.reciprocal(safe_union, approx=True)

        # localization
        xy_sq = (rx - tx) ** 2 + (ry - ty) ** 2
        msqrt = lambda v: jnp.sqrt(jnp.where(obj_b, v, 0.0))
        wh_sq = (msqrt(rw) - msqrt(tw)) ** 2 + (msqrt(rh) - msqrt(th)) ** 2

        # confidence of the responsible box vs its IoU
        conf_sq = (rc - best_iou) ** 2

        # classification: sum of squared errors over the C class channels
        cls_sq = None
        for c in range(C):
            d = pch(5 * B + c) - tch(5 + c)
            cls_sq = d * d if cls_sq is None else cls_sq + d * d

        return (obj * (lambda_coord * (xy_sq + wh_sq) + conf_sq + cls_sq)
                + lambda_noobj * noobj * noobj_conf_sq)

    def body(s, acc):
        r0 = pl.multiple_of(s * 8, 8)
        return acc + slab_loss(r0)

    out_ref[0] = lax.fori_loop(0, slabs, body, jnp.zeros((8, 128), f32))


def yolo_v1_loss(pred, target, *, S=7, B=2, C=20,
                 lambda_coord=5.0, lambda_noobj=0.5, max_tile_rows=256):
    """pred: (N, S, S, 5*B+C), target: (N, S, S, 5+C). Returns scalar loss."""
    assert max_tile_rows % 8 == 0
    N = pred.shape[0]
    Dp = 5 * B + C
    Dt = 5 + C
    M = N * S * S

    rows = -(-M // 128)                                  # lane-dense rows
    tile_rows = min(max_tile_rows, ((rows + 7) // 8) * 8)
    num_tiles = -(-rows // tile_rows)
    rows_pad = num_tiles * tile_rows
    pad = rows_pad * 128 - M

    # Channel-major, lane-dense: cells live on the (sublane, lane) axes.
    # Single fused transpose+pad pass per input; zero padding is safe because
    # padded cells have conf == 0 (noobj) and zero pred confidences -> 0 loss.
    pred_t = jnp.pad(pred.reshape(M, Dp).T, ((0, 0), (0, pad)))
    tgt_t = jnp.pad(target.reshape(M, Dt).T, ((0, 0), (0, pad)))
    pred_t = pred_t.reshape(Dp, rows_pad, 128)
    tgt_t = tgt_t.reshape(Dt, rows_pad, 128)

    kernel = functools.partial(
        _yolo_loss_kernel, S=S, B=B, C=C,
        lambda_coord=float(lambda_coord), lambda_noobj=float(lambda_noobj),
        slabs=tile_rows // 8)

    partials = pl.pallas_call(
        kernel,
        out_shape=jax.ShapeDtypeStruct((num_tiles, 8, 128), jnp.float32),
        grid=(num_tiles,),
        in_specs=[
            pl.BlockSpec((Dp, tile_rows, 128), lambda i: (0, i, 0)),
            pl.BlockSpec((Dt, tile_rows, 128), lambda i: (0, i, 0)),
        ],
        out_specs=pl.BlockSpec((1, 8, 128), lambda i: (i, 0, 0)),
        compiler_params=pltpu.CompilerParams(
            dimension_semantics=("parallel",),       # per-tile partials: no
            vmem_limit_bytes=32 * 1024 * 1024),      # cross-step state
    )(pred_t, tgt_t)

    # Tiny final reduction (num_tiles * 4 KiB) done in JAX.
    return jnp.sum(partials) / N


def _reference_loss(pred, target, *, S=7, B=2, C=20,
                    lambda_coord=5.0, lambda_noobj=0.5):
    """Plain-JAX reference with identical semantics (for sanity checking)."""
    N = pred.shape[0]
    p = pred.reshape(-1, 5 * B + C).astype(jnp.float32)
    t = target.reshape(-1, 5 + C).astype(jnp.float32)
    M = p.shape[0]
    row = jnp.arange(M)
    cell = row % (S * S)
    gx = (cell % S).astype(jnp.float32)[:, None]
    gy = (cell // S).astype(jnp.float32)[:, None]
    obj_b = t[:, 0:1] == 1.0
    obj = obj_b.astype(jnp.float32)
    noobj = (t[:, 0:1] == 0.0).astype(jnp.float32)

    def corners(x, y, w, h):
        xc = (gx + x) / S
        yc = (gy + y) / S
        return xc - w / 2, yc - h / 2, xc + w / 2, yc + h / 2

    tx, ty, tw, th = t[:, 1:2], t[:, 2:3], t[:, 3:4], t[:, 4:5]
    tx1, ty1, tx2, ty2 = corners(tx, ty, tw, th)
    t_area = (tx2 - tx1) * (ty2 - ty1)
    best = None
    nconf = jnp.zeros((M, 1), jnp.float32)
    for b in range(B):
        o = 5 * b
        pc, px, py, pw, ph = (p[:, o:o + 1], p[:, o + 1:o + 2], p[:, o + 2:o + 3],
                              p[:, o + 3:o + 4], p[:, o + 4:o + 5])
        nconf += pc * pc
        px1, py1, px2, py2 = corners(px, py, pw, ph)
        p_area = (px2 - px1) * (py2 - py1)
        iw = jnp.maximum(jnp.minimum(px2, tx2) - jnp.maximum(px1, tx1), 0.0)
        ih = jnp.maximum(jnp.minimum(py2, ty2) - jnp.maximum(py1, ty1), 0.0)
        inter = iw * ih
        iou = jnp.where(obj_b, inter / (p_area + t_area - inter), 0.0)
        cand = (iou, pc, px, py, pw, ph)
        if best is None:
            best = cand
        else:
            better = iou > best[0]
            best = tuple(jnp.where(better, c, bst) for c, bst in zip(cand, best))
    biou, rc, rx, ry, rw, rh = best
    sq = lambda v: jnp.sqrt(jnp.where(obj_b, v, 0.0))
    xy = jnp.sum(obj * ((rx - tx) ** 2 + (ry - ty) ** 2))
    wh = jnp.sum(obj * ((sq(rw) - sq(tw)) ** 2 + (sq(rh) - sq(th)) ** 2))
    oc = jnp.sum(obj * (rc - biou) ** 2)
    nc = jnp.sum(noobj * nconf)
    cl = jnp.sum(obj * (p[:, 5 * B:] - t[:, 5:]) ** 2)
    return (lambda_coord * (xy + wh) + oc + lambda_noobj * nc + cl) / N


if __name__ == "__main__":
    N, S, B, C = 2, 7, 2, 20
    key = jax.random.PRNGKey(0)
    k1, k2, k3 = jax.random.split(key, 3)
    # predictions in (0, 1) so sqrt(w), sqrt(h) stay real (as in trained YOLO)
    pred = jax.random.uniform(k1, (N, S, S, 5 * B + C), jnp.float32, 0.01, 0.99)
    target = jax.random.uniform(k2, (N, S, S, 5 + C), jnp.float32, 0.05, 0.95)
    conf = jax.random.bernoulli(k3, 0.3, (N, S, S)).astype(jnp.float32)
    target = target.at[..., 0].set(conf)  # objectness is exactly 0 or 1

    loss = yolo_v1_loss(pred, target, S=S, B=B, C=C)
    loss = jax.block_until_ready(loss)

    ref = _reference_loss(pred, target, S=S, B=B, C=C)
    assert bool(jnp.isfinite(loss)), "loss is not finite"
    rel = abs(float(loss) - float(ref)) / max(1.0, abs(float(ref)))
    # small slack for the approx EUP reciprocal used for the winning IoU value
    assert rel <= 2e-3, (float(loss), float(ref))
    print("KERNEL_OK")
</pallas_src>

<mosaic_0001>
module attributes {stable_mosaic.version = 11 : i64} {
  func.func @_yolo_loss_kernel(%arg0: i32, %arg1: memref<30x8x128xf32, #tpu.memory_space<vmem>>, %arg2: memref<25x8x128xf32, #tpu.memory_space<vmem>>, %arg3: memref<1x8x128xf32, #tpu.memory_space<vmem>>) attributes {dimension_semantics = [#tpu.dimension_semantics<parallel>], iteration_bounds = array<i64: 1>, scalar_prefetch = 0 : i64, scratch_operands = 0 : i64, tpu.core_type = #tpu.core_type<tc>, window_params = [{transform_indices = @transform_0, window_bounds = array<i64: 30, 8, 128>}, {transform_indices = @transform_1, window_bounds = array<i64: 25, 8, 128>}, {transform_indices = @transform_2, window_bounds = array<i64: 1, 8, 128>}]} {
    %cst = arith.constant 0.000000e+00 : f32
    %0 = vector.broadcast %cst : f32 to vector<8x128xf32>
    %c0_i32 = arith.constant 0 : i32
    %c8_i32 = arith.constant 8 : i32
    %1 = arith.muli %c0_i32, %c8_i32 : i32
    %2 = tpu.assume_multiple %1, 8 : i32
    %c0 = arith.constant 0 : index
    %3 = arith.index_cast %2 : i32 to index
    %c0_0 = arith.constant 0 : index
    %4 = vector.load %arg2[%c0, %3, %c0_0] : memref<25x8x128xf32, #tpu.memory_space<vmem>>, vector<1x8x128xf32>
    %5 = vector.shape_cast %4 : vector<1x8x128xf32> to vector<8x128xf32>
    %cst_1 = arith.constant 1.000000e+00 : f32
    %6 = vector.broadcast %cst_1 : f32 to vector<8x128xf32>
    %7 = arith.cmpf oeq, %5, %6 : vector<8x128xf32>
    %8 = arith.extui %7 : vector<8x128xi1> to vector<8x128xi32>
    %9 = arith.sitofp %8 : vector<8x128xi32> to vector<8x128xf32>
    %cst_2 = arith.constant 0.000000e+00 : f32
    %10 = vector.broadcast %cst_2 : f32 to vector<8x128xf32>
    %11 = arith.cmpf oeq, %5, %10 : vector<8x128xf32>
    %12 = arith.extui %11 : vector<8x128xi1> to vector<8x128xi32>
    %13 = arith.sitofp %12 : vector<8x128xi32> to vector<8x128xf32>
    %c1 = arith.constant 1 : index
    %14 = arith.index_cast %2 : i32 to index
    %c0_3 = arith.constant 0 : index
    %15 = vector.load %arg2[%c1, %14, %c0_3] : memref<25x8x128xf32, #tpu.memory_space<vmem>>, vector<1x8x128xf32>
    %16 = vector.shape_cast %15 : vector<1x8x128xf32> to vector<8x128xf32>
    %c2 = arith.constant 2 : index
    %17 = arith.index_cast %2 : i32 to index
    %c0_4 = arith.constant 0 : index
    %18 = vector.load %arg2[%c2, %17, %c0_4] : memref<25x8x128xf32, #tpu.memory_space<vmem>>, vector<1x8x128xf32>
    %19 = vector.shape_cast %18 : vector<1x8x128xf32> to vector<8x128xf32>
    %c3 = arith.constant 3 : index
    %20 = arith.index_cast %2 : i32 to index
    %c0_5 = arith.constant 0 : index
    %21 = vector.load %arg2[%c3, %20, %c0_5] : memref<25x8x128xf32, #tpu.memory_space<vmem>>, vector<1x8x128xf32>
    %22 = vector.shape_cast %21 : vector<1x8x128xf32> to vector<8x128xf32>
    %c4 = arith.constant 4 : index
    %23 = arith.index_cast %2 : i32 to index
    %c0_6 = arith.constant 0 : index
    %24 = vector.load %arg2[%c4, %23, %c0_6] : memref<25x8x128xf32, #tpu.memory_space<vmem>>, vector<1x8x128xf32>
    %25 = vector.shape_cast %24 : vector<1x8x128xf32> to vector<8x128xf32>
    %cst_7 = arith.constant 0.142857149 : f32
    %26 = vector.broadcast %cst_7 : f32 to vector<8x128xf32>
    %27 = arith.mulf %16, %26 : vector<8x128xf32>
    %cst_8 = arith.constant 0.142857149 : f32
    %28 = vector.broadcast %cst_8 : f32 to vector<8x128xf32>
    %29 = arith.mulf %19, %28 : vector<8x128xf32>
    %cst_9 = arith.constant 5.000000e-01 : f32
    %30 = vector.broadcast %cst_9 : f32 to vector<8x128xf32>
    %31 = arith.mulf %30, %22 : vector<8x128xf32>
    %cst_10 = arith.constant 5.000000e-01 : f32
    %32 = vector.broadcast %cst_10 : f32 to vector<8x128xf32>
    %33 = arith.mulf %32, %25 : vector<8x128xf32>
    %34 = arith.subf %27, %31 : vector<8x128xf32>
    %35 = arith.subf %29, %33 : vector<8x128xf32>
    %36 = arith.addf %27, %31 : vector<8x128xf32>
    %37 = arith.addf %29, %33 : vector<8x128xf32>
    %38 = arith.mulf %22, %25 : vector<8x128xf32>
    %c0_11 = arith.constant 0 : index
    %39 = arith.index_cast %2 : i32 to index
    %c0_12 = arith.constant 0 : index
    %40 = vector.load %arg1[%c0_11, %39, %c0_12] : memref<30x8x128xf32, #tpu.memory_space<vmem>>, vector<1x8x128xf32>
    %41 = vector.shape_cast %40 : vector<1x8x128xf32> to vector<8x128xf32>
    %c1_13 = arith.constant 1 : index
    %42 = arith.index_cast %2 : i32 to index
    %c0_14 = arith.constant 0 : index
    %43 = vector.load %arg1[%c1_13, %42, %c0_14] : memref<30x8x128xf32, #tpu.memory_space<vmem>>, vector<1x8x128xf32>
    %44 = vector.shape_cast %43 : vector<1x8x128xf32> to vector<8x128xf32>
    %c2_15 = arith.constant 2 : index
    %45 = arith.index_cast %2 : i32 to index
    %c0_16 = arith.constant 0 : index
    %46 = vector.load %arg1[%c2_15, %45, %c0_16] : memref<30x8x128xf32, #tpu.memory_space<vmem>>, vector<1x8x128xf32>
    %47 = vector.shape_cast %46 : vector<1x8x128xf32> to vector<8x128xf32>
    %c3_17 = arith.constant 3 : index
    %48 = arith.index_cast %2 : i32 to index
    %c0_18 = arith.constant 0 : index
    %49 = vector.load %arg1[%c3_17, %48, %c0_18] : memref<30x8x128xf32, #tpu.memory_space<vmem>>, vector<1x8x128xf32>
    %50 = vector.shape_cast %49 : vector<1x8x128xf32> to vector<8x128xf32>
    %c4_19 = arith.constant 4 : index
    %51 = arith.index_cast %2 : i32 to index
    %c0_20 = arith.constant 0 : index
    %52 = vector.load %arg1[%c4_19, %51, %c0_20] : memref<30x8x128xf32, #tpu.memory_space<vmem>>, vector<1x8x128xf32>
    %53 = vector.shape_cast %52 : vector<1x8x128xf32> to vector<8x128xf32>
    %54 = arith.mulf %41, %41 : vector<8x128xf32>
    %cst_21 = arith.constant 0.142857149 : f32
    %55 = vector.broadcast %cst_21 : f32 to vector<8x128xf32>
    %56 = arith.mulf %44, %55 : vector<8x128xf32>
    %cst_22 = arith.constant 0.142857149 : f32
    %57 = vector.broadcast %cst_22 : f32 to vector<8x128xf32>
    %58 = arith.mulf %47, %57 : vector<8x128xf32>
    %cst_23 = arith.constant 5.000000e-01 : f32
    %59 = vector.broadcast %cst_23 : f32 to vector<8x128xf32>
    %60 = arith.mulf %59, %50 : vector<8x128xf32>
    %cst_24 = arith.constant 5.000000e-01 : f32
    %61 = vector.broadcast %cst_24 : f32 to vector<8x128xf32>
    %62 = arith.mulf %61, %53 : vector<8x128xf32>
    %63 = arith.subf %56, %60 : vector<8x128xf32>
    %64 = arith.subf %58, %62 : vector<8x128xf32>
    %65 = arith.addf %56, %60 : vector<8x128xf32>
    %66 = arith.addf %58, %62 : vector<8x128xf32>
    %67 = arith.mulf %50, %53 : vector<8x128xf32>
    %68 = arith.minimumf %65, %36 : vector<8x128xf32>
    %69 = arith.maximumf %63, %34 : vector<8x128xf32>
    %70 = arith.subf %68, %69 : vector<8x128xf32>
    %cst_25 = arith.constant 0.000000e+00 : f32
    %71 = vector.broadcast %cst_25 : f32 to vector<8x128xf32>
    %72 = arith.maximumf %70, %71 : vector<8x128xf32>
    %73 = arith.minimumf %66, %37 : vector<8x128xf32>
    %74 = arith.maximumf %64, %35 : vector<8x128xf32>
    %75 = arith.subf %73, %74 : vector<8x128xf32>
    %cst_26 = arith.constant 0.000000e+00 : f32
    %76 = vector.broadcast %cst_26 : f32 to vector<8x128xf32>
    %77 = arith.maximumf %75, %76 : vector<8x128xf32>
    %78 = arith.mulf %72, %77 : vector<8x128xf32>
    %79 = arith.addf %67, %38 : vector<8x128xf32>
    %80 = arith.subf %79, %78 : vector<8x128xf32>
    %c5 = arith.constant 5 : index
    %81 = arith.index_cast %2 : i32 to index
    %c0_27 = arith.constant 0 : index
    %82 = vector.load %arg1[%c5, %81, %c0_27] : memref<30x8x128xf32, #tpu.memory_space<vmem>>, vector<1x8x128xf32>
    %83 = vector.shape_cast %82 : vector<1x8x128xf32> to vector<8x128xf32>
    %c6 = arith.constant 6 : index
    %84 = arith.index_cast %2 : i32 to index
    %c0_28 = arith.constant 0 : index
    %85 = vector.load %arg1[%c6, %84, %c0_28] : memref<30x8x128xf32, #tpu.memory_space<vmem>>, vector<1x8x128xf32>
    %86 = vector.shape_cast %85 : vector<1x8x128xf32> to vector<8x128xf32>
    %c7 = arith.constant 7 : index
    %87 = arith.index_cast %2 : i32 to index
    %c0_29 = arith.constant 0 : index
    %88 = vector.load %arg1[%c7, %87, %c0_29] : memref<30x8x128xf32, #tpu.memory_space<vmem>>, vector<1x8x128xf32>
    %89 = vector.shape_cast %88 : vector<1x8x128xf32> to vector<8x128xf32>
    %c8 = arith.constant 8 : index
    %90 = arith.index_cast %2 : i32 to index
    %c0_30 = arith.constant 0 : index
    %91 = vector.load %arg1[%c8, %90, %c0_30] : memref<30x8x128xf32, #tpu.memory_space<vmem>>, vector<1x8x128xf32>
    %92 = vector.shape_cast %91 : vector<1x8x128xf32> to vector<8x128xf32>
    %c9 = arith.constant 9 : index
    %93 = arith.index_cast %2 : i32 to index
    %c0_31 = arith.constant 0 : index
    %94 = vector.load %arg1[%c9, %93, %c0_31] : memref<30x8x128xf32, #tpu.memory_space<vmem>>, vector<1x8x128xf32>
    %95 = vector.shape_cast %94 : vector<1x8x128xf32> to vector<8x128xf32>
    %96 = arith.mulf %83, %83 : vector<8x128xf32>
    %97 = arith.addf %54, %96 : vector<8x128xf32>
    %cst_32 = arith.constant 0.142857149 : f32
    %98 = vector.broadcast %cst_32 : f32 to vector<8x128xf32>
    %99 = arith.mulf %86, %98 : vector<8x128xf32>
    %cst_33 = arith.constant 0.142857149 : f32
    %100 = vector.broadcast %cst_33 : f32 to vector<8x128xf32>
    %101 = arith.mulf %89, %100 : vector<8x128xf32>
    %cst_34 = arith.constant 5.000000e-01 : f32
    %102 = vector.broadcast %cst_34 : f32 to vector<8x128xf32>
    %103 = arith.mulf %102, %92 : vector<8x128xf32>
    %cst_35 = arith.constant 5.000000e-01 : f32
    %104 = vector.broadcast %cst_35 : f32 to vector<8x128xf32>
    %105 = arith.mulf %104, %95 : vector<8x128xf32>
    %106 = arith.subf %99, %103 : vector<8x128xf32>
    %107 = arith.subf %101, %105 : vector<8x128xf32>
    %108 = arith.addf %99, %103 : vector<8x128xf32>
    %109 = arith.addf %101, %105 : vector<8x128xf32>
    %110 = arith.mulf %92, %95 : vector<8x128xf32>
    %111 = arith.minimumf %108, %36 : vector<8x128xf32>
    %112 = arith.maximumf %106, %34 : vector<8x128xf32>
    %113 = arith.subf %111, %112 : vector<8x128xf32>
    %cst_36 = arith.constant 0.000000e+00 : f32
    %114 = vector.broadcast %cst_36 : f32 to vector<8x128xf32>
    %115 = arith.maximumf %113, %114 : vector<8x128xf32>
    %116 = arith.minimumf %109, %37 : vector<8x128xf32>
    %117 = arith.maximumf %107, %35 : vector<8x128xf32>
    %118 = arith.subf %116, %117 : vector<8x128xf32>
    %cst_37 = arith.constant 0.000000e+00 : f32
    %119 = vector.broadcast %cst_37 : f32 to vector<8x128xf32>
    %120 = arith.maximumf %118, %119 : vector<8x128xf32>
    %121 = arith.mulf %115, %120 : vector<8x128xf32>
    %122 = arith.addf %110, %38 : vector<8x128xf32>
    %123 = arith.subf %122, %121 : vector<8x128xf32>
    %124 = arith.mulf %121, %80 : vector<8x128xf32>
    %125 = arith.mulf %78, %123 : vector<8x128xf32>
    %126 = arith.cmpf ogt, %124, %125 : vector<8x128xf32>
    %127 = arith.select %126, %121, %78 : vector<8x128xi1>, vector<8x128xf32>
    %128 = arith.select %126, %123, %80 : vector<8x128xi1>, vector<8x128xf32>
    %129 = arith.select %126, %83, %41 : vector<8x128xi1>, vector<8x128xf32>
    %130 = arith.select %126, %86, %44 : vector<8x128xi1>, vector<8x128xf32>
    %131 = arith.select %126, %89, %47 : vector<8x128xi1>, vector<8x128xf32>
    %132 = arith.select %126, %92, %50 : vector<8x128xi1>, vector<8x128xf32>
    %133 = arith.select %126, %95, %53 : vector<8x128xi1>, vector<8x128xf32>
    %cst_38 = arith.constant 1.000000e+00 : f32
    %134 = vector.broadcast %cst_38 : f32 to vector<8x128xf32>
    %135 = arith.select %7, %128, %134 : vector<8x128xi1>, vector<8x128xf32>
    %136 = tpu.reciprocal %135 {approx = true} : vector<8x128xf32> -> vector<8x128xf32>
    %137 = arith.mulf %127, %136 : vector<8x128xf32>
    %138 = arith.subf %130, %16 : vector<8x128xf32>
    %139 = arith.mulf %138, %138 : vector<8x128xf32>
    %140 = arith.subf %131, %19 : vector<8x128xf32>
    %141 = arith.mulf %140, %140 : vector<8x128xf32>
    %142 = arith.addf %139, %141 : vector<8x128xf32>
    %cst_39 = arith.constant 0.000000e+00 : f32
    %143 = vector.broadcast %cst_39 : f32 to vector<8x128xf32>
    %144 = arith.select %7, %132, %143 : vector<8x128xi1>, vector<8x128xf32>
    %145 = math.sqrt %144 : vector<8x128xf32>
    %cst_40 = arith.constant 0.000000e+00 : f32
    %146 = vector.broadcast %cst_40 : f32 to vector<8x128xf32>
    %147 = arith.select %7, %22, %146 : vector<8x128xi1>, vector<8x128xf32>
    %148 = math.sqrt %147 : vector<8x128xf32>
    %149 = arith.subf %145, %148 : vector<8x128xf32>
    %150 = arith.mulf %149, %149 : vector<8x128xf32>
    %cst_41 = arith.constant 0.000000e+00 : f32
    %151 = vector.broadcast %cst_41 : f32 to vector<8x128xf32>
    %152 = arith.select %7, %133, %151 : vector<8x128xi1>, vector<8x128xf32>
    %153 = math.sqrt %152 : vector<8x128xf32>
    %cst_42 = arith.constant 0.000000e+00 : f32
    %154 = vector.broadcast %cst_42 : f32 to vector<8x128xf32>
    %155 = arith.select %7, %25, %154 : vector<8x128xi1>, vector<8x128xf32>
    %156 = math.sqrt %155 : vector<8x128xf32>
    %157 = arith.subf %153, %156 : vector<8x128xf32>
    %158 = arith.mulf %157, %157 : vector<8x128xf32>
    %159 = arith.addf %150, %158 : vector<8x128xf32>
    %160 = arith.subf %129, %137 : vector<8x128xf32>
    %161 = arith.mulf %160, %160 : vector<8x128xf32>
    %c10 = arith.constant 10 : index
    %162 = arith.index_cast %2 : i32 to index
    %c0_43 = arith.constant 0 : index
    %163 = vector.load %arg1[%c10, %162, %c0_43] : memref<30x8x128xf32, #tpu.memory_space<vmem>>, vector<1x8x128xf32>
    %164 = vector.shape_cast %163 : vector<1x8x128xf32> to vector<8x128xf32>
    %c5_44 = arith.constant 5 : index
    %165 = arith.index_cast %2 : i32 to index
    %c0_45 = arith.constant 0 : index
    %166 = vector.load %arg2[%c5_44, %165, %c0_45] : memref<25x8x128xf32, #tpu.memory_space<vmem>>, vector<1x8x128xf32>
    %167 = vector.shape_cast %166 : vector<1x8x128xf32> to vector<8x128xf32>
    %168 = arith.subf %164, %167 : vector<8x128xf32>
    %169 = arith.mulf %168, %168 : vector<8x128xf32>
    %c11 = arith.constant 11 : index
    %170 = arith.index_cast %2 : i32 to index
    %c0_46 = arith.constant 0 : index
    %171 = vector.load %arg1[%c11, %170, %c0_46] : memref<30x8x128xf32, #tpu.memory_space<vmem>>, vector<1x8x128xf32>
    %172 = vector.shape_cast %171 : vector<1x8x128xf32> to vector<8x128xf32>
    %c6_47 = arith.constant 6 : index
    %173 = arith.index_cast %2 : i32 to index
    %c0_48 = arith.constant 0 : index
    %174 = vector.load %arg2[%c6_47, %173, %c0_48] : memref<25x8x128xf32, #tpu.memory_space<vmem>>, vector<1x8x128xf32>
    %175 = vector.shape_cast %174 : vector<1x8x128xf32> to vector<8x128xf32>
    %176 = arith.subf %172, %175 : vector<8x128xf32>
    %177 = arith.mulf %176, %176 : vector<8x128xf32>
    %178 = arith.addf %169, %177 : vector<8x128xf32>
    %c12 = arith.constant 12 : index
    %179 = arith.index_cast %2 : i32 to index
    %c0_49 = arith.constant 0 : index
    %180 = vector.load %arg1[%c12, %179, %c0_49] : memref<30x8x128xf32, #tpu.memory_space<vmem>>, vector<1x8x128xf32>
    %181 = vector.shape_cast %180 : vector<1x8x128xf32> to vector<8x128xf32>
    %c7_50 = arith.constant 7 : index
    %182 = arith.index_cast %2 : i32 to index
    %c0_51 = arith.constant 0 : index
    %183 = vector.load %arg2[%c7_50, %182, %c0_51] : memref<25x8x128xf32, #tpu.memory_space<vmem>>, vector<1x8x128xf32>
    %184 = vector.shape_cast %183 : vector<1x8x128xf32> to vector<8x128xf32>
    %185 = arith.subf %181, %184 : vector<8x128xf32>
    %186 = arith.mulf %185, %185 : vector<8x128xf32>
    %187 = arith.addf %178, %186 : vector<8x128xf32>
    %c13 = arith.constant 13 : index
    %188 = arith.index_cast %2 : i32 to index
    %c0_52 = arith.constant 0 : index
    %189 = vector.load %arg1[%c13, %188, %c0_52] : memref<30x8x128xf32, #tpu.memory_space<vmem>>, vector<1x8x128xf32>
    %190 = vector.shape_cast %189 : vector<1x8x128xf32> to vector<8x128xf32>
    %c8_53 = arith.constant 8 : index
    %191 = arith.index_cast %2 : i32 to index
    %c0_54 = arith.constant 0 : index
    %192 = vector.load %arg2[%c8_53, %191, %c0_54] : memref<25x8x128xf32, #tpu.memory_space<vmem>>, vector<1x8x128xf32>
    %193 = vector.shape_cast %192 : vector<1x8x128xf32> to vector<8x128xf32>
    %194 = arith.subf %190, %193 : vector<8x128xf32>
    %195 = arith.mulf %194, %194 : vector<8x128xf32>
    %196 = arith.addf %187, %195 : vector<8x128xf32>
    %c14 = arith.constant 14 : index
    %197 = arith.index_cast %2 : i32 to index
    %c0_55 = arith.constant 0 : index
    %198 = vector.load %arg1[%c14, %197, %c0_55] : memref<30x8x128xf32, #tpu.memory_space<vmem>>, vector<1x8x128xf32>
    %199 = vector.shape_cast %198 : vector<1x8x128xf32> to vector<8x128xf32>
    %c9_56 = arith.constant 9 : index
    %200 = arith.index_cast %2 : i32 to index
    %c0_57 = arith.constant 0 : index
    %201 = vector.load %arg2[%c9_56, %200, %c0_57] : memref<25x8x128xf32, #tpu.memory_space<vmem>>, vector<1x8x128xf32>
    %202 = vector.shape_cast %201 : vector<1x8x128xf32> to vector<8x128xf32>
    %203 = arith.subf %199, %202 : vector<8x128xf32>
    %204 = arith.mulf %203, %203 : vector<8x128xf32>
    %205 = arith.addf %196, %204 : vector<8x128xf32>
    %c15 = arith.constant 15 : index
    %206 = arith.index_cast %2 : i32 to index
    %c0_58 = arith.constant 0 : index
    %207 = vector.load %arg1[%c15, %206, %c0_58] : memref<30x8x128xf32, #tpu.memory_space<vmem>>, vector<1x8x128xf32>
    %208 = vector.shape_cast %207 : vector<1x8x128xf32> to vector<8x128xf32>
    %c10_59 = arith.constant 10 : index
    %209 = arith.index_cast %2 : i32 to index
    %c0_60 = arith.constant 0 : index
    %210 = vector.load %arg2[%c10_59, %209, %c0_60] : memref<25x8x128xf32, #tpu.memory_space<vmem>>, vector<1x8x128xf32>
    %211 = vector.shape_cast %210 : vector<1x8x128xf32> to vector<8x128xf32>
    %212 = arith.subf %208, %211 : vector<8x128xf32>
    %213 = arith.mulf %212, %212 : vector<8x128xf32>
    %214 = arith.addf %205, %213 : vector<8x128xf32>
    %c16 = arith.constant 16 : index
    %215 = arith.index_cast %2 : i32 to index
    %c0_61 = arith.constant 0 : index
    %216 = vector.load %arg1[%c16, %215, %c0_61] : memref<30x8x128xf32, #tpu.memory_space<vmem>>, vector<1x8x128xf32>
    %217 = vector.shape_cast %216 : vector<1x8x128xf32> to vector<8x128xf32>
    %c11_62 = arith.constant 11 : index
    %218 = arith.index_cast %2 : i32 to index
    %c0_63 = arith.constant 0 : index
    %219 = vector.load %arg2[%c11_62, %218, %c0_63] : memref<25x8x128xf32, #tpu.memory_space<vmem>>, vector<1x8x128xf32>
    %220 = vector.shape_cast %219 : vector<1x8x128xf32> to vector<8x128xf32>
    %221 = arith.subf %217, %220 : vector<8x128xf32>
    %222 = arith.mulf %221, %221 : vector<8x128xf32>
    %223 = arith.addf %214, %222 : vector<8x128xf32>
    %c17 = arith.constant 17 : index
    %224 = arith.index_cast %2 : i32 to index
    %c0_64 = arith.constant 0 : index
    %225 = vector.load %arg1[%c17, %224, %c0_64] : memref<30x8x128xf32, #tpu.memory_space<vmem>>, vector<1x8x128xf32>
    %226 = vector.shape_cast %225 : vector<1x8x128xf32> to vector<8x128xf32>
    %c12_65 = arith.constant 12 : index
    %227 = arith.index_cast %2 : i32 to index
    %c0_66 = arith.constant 0 : index
    %228 = vector.load %arg2[%c12_65, %227, %c0_66] : memref<25x8x128xf32, #tpu.memory_space<vmem>>, vector<1x8x128xf32>
    %229 = vector.shape_cast %228 : vector<1x8x128xf32> to vector<8x128xf32>
    %230 = arith.subf %226, %229 : vector<8x128xf32>
    %231 = arith.mulf %230, %230 : vector<8x128xf32>
    %232 = arith.addf %223, %231 : vector<8x128xf32>
    %c18 = arith.constant 18 : index
    %233 = arith.index_cast %2 : i32 to index
    %c0_67 = arith.constant 0 : index
    %234 = vector.load %arg1[%c18, %233, %c0_67] : memref<30x8x128xf32, #tpu.memory_space<vmem>>, vector<1x8x128xf32>
    %235 = vector.shape_cast %234 : vector<1x8x128xf32> to vector<8x128xf32>
    %c13_68 = arith.constant 13 : index
    %236 = arith.index_cast %2 : i32 to index
    %c0_69 = arith.constant 0 : index
    %237 = vector.load %arg2[%c13_68, %236, %c0_69] : memref<25x8x128xf32, #tpu.memory_space<vmem>>, vector<1x8x128xf32>
    %238 = vector.shape_cast %237 : vector<1x8x128xf32> to vector<8x128xf32>
    %239 = arith.subf %235, %238 : vector<8x128xf32>
    %240 = arith.mulf %239, %239 : vector<8x128xf32>
    %241 = arith.addf %232, %240 : vector<8x128xf32>
    %c19 = arith.constant 19 : index
    %242 = arith.index_cast %2 : i32 to index
    %c0_70 = arith.constant 0 : index
    %243 = vector.load %arg1[%c19, %242, %c0_70] : memref<30x8x128xf32, #tpu.memory_space<vmem>>, vector<1x8x128xf32>
    %244 = vector.shape_cast %243 : vector<1x8x128xf32> to vector<8x128xf32>
    %c14_71 = arith.constant 14 : index
    %245 = arith.index_cast %2 : i32 to index
    %c0_72 = arith.constant 0 : index
    %246 = vector.load %arg2[%c14_71, %245, %c0_72] : memref<25x8x128xf32, #tpu.memory_space<vmem>>, vector<1x8x128xf32>
    %247 = vector.shape_cast %246 : vector<1x8x128xf32> to vector<8x128xf32>
    %248 = arith.subf %244, %247 : vector<8x128xf32>
    %249 = arith.mulf %248, %248 : vector<8x128xf32>
    %250 = arith.addf %241, %249 : vector<8x128xf32>
    %c20 = arith.constant 20 : index
    %251 = arith.index_cast %2 : i32 to index
    %c0_73 = arith.constant 0 : index
    %252 = vector.load %arg1[%c20, %251, %c0_73] : memref<30x8x128xf32, #tpu.memory_space<vmem>>, vector<1x8x128xf32>
    %253 = vector.shape_cast %252 : vector<1x8x128xf32> to vector<8x128xf32>
    %c15_74 = arith.constant 15 : index
    %254 = arith.index_cast %2 : i32 to index
    %c0_75 = arith.constant 0 : index
    %255 = vector.load %arg2[%c15_74, %254, %c0_75] : memref<25x8x128xf32, #tpu.memory_space<vmem>>, vector<1x8x128xf32>
    %256 = vector.shape_cast %255 : vector<1x8x128xf32> to vector<8x128xf32>
    %257 = arith.subf %253, %256 : vector<8x128xf32>
    %258 = arith.mulf %257, %257 : vector<8x128xf32>
    %259 = arith.addf %250, %258 : vector<8x128xf32>
    %c21 = arith.constant 21 : index
    %260 = arith.index_cast %2 : i32 to index
    %c0_76 = arith.constant 0 : index
    %261 = vector.load %arg1[%c21, %260, %c0_76] : memref<30x8x128xf32, #tpu.memory_space<vmem>>, vector<1x8x128xf32>
    %262 = vector.shape_cast %261 : vector<1x8x128xf32> to vector<8x128xf32>
    %c16_77 = arith.constant 16 : index
    %263 = arith.index_cast %2 : i32 to index
    %c0_78 = arith.constant 0 : index
    %264 = vector.load %arg2[%c16_77, %263, %c0_78] : memref<25x8x128xf32, #tpu.memory_space<vmem>>, vector<1x8x128xf32>
    %265 = vector.shape_cast %264 : vector<1x8x128xf32> to vector<8x128xf32>
    %266 = arith.subf %262, %265 : vector<8x128xf32>
    %267 = arith.mulf %266, %266 : vector<8x128xf32>
    %268 = arith.addf %259, %267 : vector<8x128xf32>
    %c22 = arith.constant 22 : index
    %269 = arith.index_cast %2 : i32 to index
    %c0_79 = arith.constant 0 : index
    %270 = vector.load %arg1[%c22, %269, %c0_79] : memref<30x8x128xf32, #tpu.memory_space<vmem>>, vector<1x8x128xf32>
    %271 = vector.shape_cast %270 : vector<1x8x128xf32> to vector<8x128xf32>
    %c17_80 = arith.constant 17 : index
    %272 = arith.index_cast %2 : i32 to index
    %c0_81 = arith.constant 0 : index
    %273 = vector.load %arg2[%c17_80, %272, %c0_81] : memref<25x8x128xf32, #tpu.memory_space<vmem>>, vector<1x8x128xf32>
    %274 = vector.shape_cast %273 : vector<1x8x128xf32> to vector<8x128xf32>
    %275 = arith.subf %271, %274 : vector<8x128xf32>
    %276 = arith.mulf %275, %275 : vector<8x128xf32>
    %277 = arith.addf %268, %276 : vector<8x128xf32>
    %c23 = arith.constant 23 : index
    %278 = arith.index_cast %2 : i32 to index
    %c0_82 = arith.constant 0 : index
    %279 = vector.load %arg1[%c23, %278, %c0_82] : memref<30x8x128xf32, #tpu.memory_space<vmem>>, vector<1x8x128xf32>
    %280 = vector.shape_cast %279 : vector<1x8x128xf32> to vector<8x128xf32>
    %c18_83 = arith.constant 18 : index
    %281 = arith.index_cast %2 : i32 to index
    %c0_84 = arith.constant 0 : index
    %282 = vector.load %arg2[%c18_83, %281, %c0_84] : memref<25x8x128xf32, #tpu.memory_space<vmem>>, vector<1x8x128xf32>
    %283 = vector.shape_cast %282 : vector<1x8x128xf32> to vector<8x128xf32>
    %284 = arith.subf %280, %283 : vector<8x128xf32>
    %285 = arith.mulf %284, %284 : vector<8x128xf32>
    %286 = arith.addf %277, %285 : vector<8x128xf32>
    %c24 = arith.constant 24 : index
    %287 = arith.index_cast %2 : i32 to index
    %c0_85 = arith.constant 0 : index
    %288 = vector.load %arg1[%c24, %287, %c0_85] : memref<30x8x128xf32, #tpu.memory_space<vmem>>, vector<1x8x128xf32>
    %289 = vector.shape_cast %288 : vector<1x8x128xf32> to vector<8x128xf32>
    %c19_86 = arith.constant 19 : index
    %290 = arith.index_cast %2 : i32 to index
    %c0_87 = arith.constant 0 : index
    %291 = vector.load %arg2[%c19_86, %290, %c0_87] : memref<25x8x128xf32, #tpu.memory_space<vmem>>, vector<1x8x128xf32>
    %292 = vector.shape_cast %291 : vector<1x8x128xf32> to vector<8x128xf32>
    %293 = arith.subf %289, %292 : vector<8x128xf32>
    %294 = arith.mulf %293, %293 : vector<8x128xf32>
    %295 = arith.addf %286, %294 : vector<8x128xf32>
    %c25 = arith.constant 25 : index
    %296 = arith.index_cast %2 : i32 to index
    %c0_88 = arith.constant 0 : index
    %297 = vector.load %arg1[%c25, %296, %c0_88] : memref<30x8x128xf32, #tpu.memory_space<vmem>>, vector<1x8x128xf32>
    %298 = vector.shape_cast %297 : vector<1x8x128xf32> to vector<8x128xf32>
    %c20_89 = arith.constant 20 : index
    %299 = arith.index_cast %2 : i32 to index
    %c0_90 = arith.constant 0 : index
    %300 = vector.load %arg2[%c20_89, %299, %c0_90] : memref<25x8x128xf32, #tpu.memory_space<vmem>>, vector<1x8x128xf32>
    %301 = vector.shape_cast %300 : vector<1x8x128xf32> to vector<8x128xf32>
    %302 = arith.subf %298, %301 : vector<8x128xf32>
    %303 = arith.mulf %302, %302 : vector<8x128xf32>
    %304 = arith.addf %295, %303 : vector<8x128xf32>
    %c26 = arith.constant 26 : index
    %305 = arith.index_cast %2 : i32 to index
    %c0_91 = arith.constant 0 : index
    %306 = vector.load %arg1[%c26, %305, %c0_91] : memref<30x8x128xf32, #tpu.memory_space<vmem>>, vector<1x8x128xf32>
    %307 = vector.shape_cast %306 : vector<1x8x128xf32> to vector<8x128xf32>
    %c21_92 = arith.constant 21 : index
    %308 = arith.index_cast %2 : i32 to index
    %c0_93 = arith.constant 0 : index
    %309 = vector.load %arg2[%c21_92, %308, %c0_93] : memref<25x8x128xf32, #tpu.memory_space<vmem>>, vector<1x8x128xf32>
    %310 = vector.shape_cast %309 : vector<1x8x128xf32> to vector<8x128xf32>
    %311 = arith.subf %307, %310 : vector<8x128xf32>
    %312 = arith.mulf %311, %311 : vector<8x128xf32>
    %313 = arith.addf %304, %312 : vector<8x128xf32>
    %c27 = arith.constant 27 : index
    %314 = arith.index_cast %2 : i32 to index
    %c0_94 = arith.constant 0 : index
    %315 = vector.load %arg1[%c27, %314, %c0_94] : memref<30x8x128xf32, #tpu.memory_space<vmem>>, vector<1x8x128xf32>
    %316 = vector.shape_cast %315 : vector<1x8x128xf32> to vector<8x128xf32>
    %c22_95 = arith.constant 22 : index
    %317 = arith.index_cast %2 : i32 to index
    %c0_96 = arith.constant 0 : index
    %318 = vector.load %arg2[%c22_95, %317, %c0_96] : memref<25x8x128xf32, #tpu.memory_space<vmem>>, vector<1x8x128xf32>
    %319 = vector.shape_cast %318 : vector<1x8x128xf32> to vector<8x128xf32>
    %320 = arith.subf %316, %319 : vector<8x128xf32>
    %321 = arith.mulf %320, %320 : vector<8x128xf32>
    %322 = arith.addf %313, %321 : vector<8x128xf32>
    %c28 = arith.constant 28 : index
    %323 = arith.index_cast %2 : i32 to index
    %c0_97 = arith.constant 0 : index
    %324 = vector.load %arg1[%c28, %323, %c0_97] : memref<30x8x128xf32, #tpu.memory_space<vmem>>, vector<1x8x128xf32>
    %325 = vector.shape_cast %324 : vector<1x8x128xf32> to vector<8x128xf32>
    %c23_98 = arith.constant 23 : index
    %326 = arith.index_cast %2 : i32 to index
    %c0_99 = arith.constant 0 : index
    %327 = vector.load %arg2[%c23_98, %326, %c0_99] : memref<25x8x128xf32, #tpu.memory_space<vmem>>, vector<1x8x128xf32>
    %328 = vector.shape_cast %327 : vector<1x8x128xf32> to vector<8x128xf32>
    %329 = arith.subf %325, %328 : vector<8x128xf32>
    %330 = arith.mulf %329, %329 : vector<8x128xf32>
    %331 = arith.addf %322, %330 : vector<8x128xf32>
    %c29 = arith.constant 29 : index
    %332 = arith.index_cast %2 : i32 to index
    %c0_100 = arith.constant 0 : index
    %333 = vector.load %arg1[%c29, %332, %c0_100] : memref<30x8x128xf32, #tpu.memory_space<vmem>>, vector<1x8x128xf32>
    %334 = vector.shape_cast %333 : vector<1x8x128xf32> to vector<8x128xf32>
    %c24_101 = arith.constant 24 : index
    %335 = arith.index_cast %2 : i32 to index
    %c0_102 = arith.constant 0 : index
    %336 = vector.load %arg2[%c24_101, %335, %c0_102] : memref<25x8x128xf32, #tpu.memory_space<vmem>>, vector<1x8x128xf32>
    %337 = vector.shape_cast %336 : vector<1x8x128xf32> to vector<8x128xf32>
    %338 = arith.subf %334, %337 : vector<8x128xf32>
    %339 = arith.mulf %338, %338 : vector<8x128xf32>
    %340 = arith.addf %331, %339 : vector<8x128xf32>
    %341 = arith.addf %142, %159 : vector<8x128xf32>
    %cst_103 = arith.constant 5.000000e+00 : f32
    %342 = vector.broadcast %cst_103 : f32 to vector<8x128xf32>
    %343 = arith.mulf %342, %341 : vector<8x128xf32>
    %344 = arith.addf %343, %161 : vector<8x128xf32>
    %345 = arith.addf %344, %340 : vector<8x128xf32>
    %346 = arith.mulf %9, %345 : vector<8x128xf32>
    %cst_104 = arith.constant 5.000000e-01 : f32
    %347 = vector.broadcast %cst_104 : f32 to vector<8x128xf32>
    %348 = arith.mulf %347, %13 : vector<8x128xf32>
    %349 = arith.mulf %348, %97 : vector<8x128xf32>
    %350 = arith.addf %346, %349 : vector<8x128xf32>
    %351 = arith.addf %0, %350 : vector<8x128xf32>
    %c1_i32 = arith.constant 1 : i32
    %c0_105 = arith.constant 0 : index
    %c0_106 = arith.constant 0 : index
    %c0_107 = arith.constant 0 : index
    %352 = vector.load %arg3[%c0_105, %c0_106, %c0_107] : memref<1x8x128xf32, #tpu.memory_space<vmem>>, vector<1x8x128xf32>
    %353 = vector.shape_cast %352 : vector<1x8x128xf32> to vector<8x128xf32>
    %354 = vector.shape_cast %351 : vector<8x128xf32> to vector<1x8x128xf32>
    tpu.vector_store %arg3[%c0_105, %c0_106, %c0_107], %354 {strides = array<i32>} : memref<1x8x128xf32, #tpu.memory_space<vmem>>, vector<1x8x128xf32>,
    return
  }
  func.func @transform_0(%arg0: i32) -> (i32, i32, i32) {
    %c0_i32 = arith.constant 0 : i32
    %c0_i32_0 = arith.constant 0 : i32
    %c0_i32_1 = arith.constant 0 : i32
    return %c0_i32, %arg0, %c0_i32_0 : i32, i32, i32
  }
  func.func @transform_1(%arg0: i32) -> (i32, i32, i32) {
    %c0_i32 = arith.constant 0 : i32
    %c0_i32_0 = arith.constant 0 : i32
    %c0_i32_1 = arith.constant 0 : i32
    return %c0_i32, %arg0, %c0_i32_0 : i32, i32, i32
  }
  func.func @transform_2(%arg0: i32) -> (i32, i32, i32) {
    %c0_i32 = arith.constant 0 : i32
    %c0_i32_0 = arith.constant 0 : i32
    %c0_i32_1 = arith.constant 0 : i32
    return %arg0, %c0_i32, %c0_i32_0 : i32, i32, i32
  }
}

</mosaic_0001>

<llo_original>
// kernel: tpu_custom_call.1
$region0: #{tpu_custom_call.1}
  #allocation0 [shape = 'u32[]', space=smem, size = 0x4, offset = 0x4, fixed_abs, tag = 'smem constant byte address 0x4 - core index']
  #allocation1 [shape = 'u32[72,128]{1,0:T(1,128)}', space=vmem, size = 0x9000, scoped, tag = 'internal scratch']
  %s0 = inlined_call_operand.hbm [shape: f32[30,8,128], index: 0, kind: input, shape index: {}]
  %s1 = inlined_call_operand.hbm [shape: f32[25,8,128], index: 1, kind: input, shape index: {}]
  %s2 = inlined_call_operand.hbm [shape: f32[1,8,128], index: 2, kind: output, shape index: {}]
  %s3 = sld [smem:[#allocation0]]
  $region26: #{tpu_custom_call.1} parent=0
    _
  %s5 = ssub.s32 1, %s3
  %s6 = scalar_select 0, %s5, %s3
  $region1: #{tpu_custom_call.1} parent=0
    #allocation2 [shape = 'u8[122880]{0}', space=vmem, size = 0x1e000, scoped, tag = 'input window, operand 0, single buffered']
    #allocation3 [shape = 's32[1]{0}', space=sflag, size = 0x4, scoped, tag = 'scoped memory for tpu_custom_call.1']
    #allocation4 [shape = 's32[1]{0}', space=sflag, size = 0x4, scoped, tag = 'scoped memory for tpu_custom_call.1']
    #allocation5 [shape = 'u8[102400]{0}', space=vmem, size = 0x19000, scoped, tag = 'input window, operand 1, single buffered']
    #allocation6 [shape = 's32[1]{0}', space=sflag, size = 0x4, scoped, tag = 'scoped memory for tpu_custom_call.1']
    #allocation7 [shape = 'u8[4096]{0}', space=vmem, size = 0x1000, scoped, tag = 'output window, operand 0, single buffered']
    %7 = vsyncpa [#allocation3], 0
    %8 = vsyncpa [#allocation6], 0
    %9 = vsyncpa [#allocation4], 0
    // Predicated region
    $region2: #{tpu_custom_call.1} parent=1 // pred_check
      _
    $region3: #{tpu_custom_call.1} parent=1 // pred_check_branch
      %11 = sbr.rel (0) target = $region5
    $region4: #{tpu_custom_call.1} parent=1 // pred_region
      %13 = vsyncadd [#allocation3], 0
      %s14 = sshll.u32 %s0, 4
      %s15 = int_to_ptr.hbm [resolvable:$true] %s14
      %s16 = sshll.u32 [#allocation2], 4
      %s17 = int_to_ptr.vmem [resolvable:$true] %s16
      %22 = dma.hbm_to_vmem [thread:$0]  %s15, 3840, %s17, [#allocation3], 128, 128, 8
    $region5: #{tpu_custom_call.1} parent=1 // pred_fallthru
      _
    // Predicated region
    $region6: #{tpu_custom_call.1} parent=1 // pred_check
      _
    $region7: #{tpu_custom_call.1} parent=1 // pred_check_branch
      %24 = sbr.rel (0) target = $region9
    $region8: #{tpu_custom_call.1} parent=1 // pred_region
      %26 = vsyncadd [#allocation6], 0
      %s27 = sshll.u32 %s1, 4
      %s28 = int_to_ptr.hbm [resolvable:$true] %s27
      %s29 = sshll.u32 [#allocation5], 4
      %s30 = int_to_ptr.vmem [resolvable:$true] %s29
      %35 = dma.hbm_to_vmem [thread:$0]  %s28, 3200, %s30, [#allocation6], 128, 128, 8
    $region9: #{tpu_custom_call.1} parent=1 // pred_fallthru
      _
    // Predicated region
    $region10: #{tpu_custom_call.1} parent=1 // pred_check
      _
    $region11: #{tpu_custom_call.1} parent=1 // pred_check_branch
      %37 = sbr.rel (0) target = $region13
    $region12: #{tpu_custom_call.1} parent=1 // pred_region
      %39 = dma.done [#allocation3], 3840
    $region13: #{tpu_custom_call.1} parent=1 // pred_fallthru
      _
    // Predicated region
    $region14: #{tpu_custom_call.1} parent=1 // pred_check
      _
    $region15: #{tpu_custom_call.1} parent=1 // pred_check_branch
      %41 = sbr.rel (0) target = $region17
    $region16: #{tpu_custom_call.1} parent=1 // pred_region
      %43 = dma.done [#allocation6], 3200
    $region17: #{tpu_custom_call.1} parent=1 // pred_fallthru
      _
    %v44 = vld [vmem:[#allocation5] sm:$0xff]
    %vm45 = vcmp.eq.f32.partialorder %v44, 1.0
    %v46 = vsel %vm45, 1, 0
    %v47 = vcvt.s32.f32 %v46
    %vm48 = vcmp.eq.f32.partialorder %v44, 0.0
    %v49 = vsel %vm48, 1, 0
    %v50 = vcvt.s32.f32 %v49
    %s51 = sadd.s32 0, 8
    %s52 = scalar_lea.vmem [#allocation5], %s51
    %v53 = vld [vmem:[%s52] sm:$0xff]
    %s54 = sadd.s32 0, 16
    %s55 = scalar_lea.vmem [#allocation5], %s54
    %v56 = vld [vmem:[%s55] sm:$0xff]
    %s57 = sadd.s32 0, 24
    %s58 = scalar_lea.vmem [#allocation5], %s57
    %v59 = vld [vmem:[%s58] sm:$0xff]
    %s60 = sadd.s32 0, 32
    %s61 = scalar_lea.vmem [#allocation5], %s60
    %v62 = vld [vmem:[%s61] sm:$0xff]
    %v63 = vmul.f32 %v53, 0.14285715
    %v64 = vmul.f32 %v56, 0.14285715
    %v65 = vmul.f32 %v59, 0.5
    %v66 = vmul.f32 %v62, 0.5
    %v67 = vsub.f32 %v63, %v65
    %v68 = vsub.f32 %v64, %v66
    %v69 = vadd.f32 %v63, %v65
    %v70 = vadd.f32 %v64, %v66
    %v71 = vmul.f32 %v59, %v62
    %v72 = vld [vmem:[#allocation2] sm:$0xff]
    %s73 = scalar_lea.vmem [#allocation2], %s51
    %v74 = vld [vmem:[%s73] sm:$0xff]
    %s75 = scalar_lea.vmem [#allocation2], %s54
    %v76 = vld [vmem:[%s75] sm:$0xff]
    %s77 = scalar_lea.vmem [#allocation2], %s57
    %v78 = vld [vmem:[%s77] sm:$0xff]
    %s79 = scalar_lea.vmem [#allocation2], %s60
    %v80 = vld [vmem:[%s79] sm:$0xff]
    %v81 = vmul.f32 %v72, %v72
    %v82 = vmul.f32 %v74, 0.14285715
    %v83 = vmul.f32 %v76, 0.14285715
    %v84 = vmul.f32 %v78, 0.5
    %v85 = vmul.f32 %v80, 0.5
    %v86 = vsub.f32 %v82, %v84
    %v87 = vsub.f32 %v83, %v85
    %v88 = vadd.f32 %v82, %v84
    %v89 = vadd.f32 %v83, %v85
    %v90 = vmul.f32 %v78, %v80
    %v91 = vmin.f32 %v88, %v69
    %v92 = vmax.f32 %v86, %v67
    %v93 = vsub.f32 %v91, %v92
    %v94 = vmax.f32 %v93, 0.0
    %v95 = vmin.f32 %v89, %v70
    %v96 = vmax.f32 %v87, %v68
    %v97 = vsub.f32 %v95, %v96
    %v98 = vmax.f32 %v97, 0.0
    %v99 = vmul.f32 %v94, %v98
    %v100 = vadd.f32 %v90, %v71
    %v101 = vsub.f32 %v100, %v99
    %s102 = sadd.s32 0, 40
    %s103 = scalar_lea.vmem [#allocation2], %s102
    %v104 = vld [vmem:[%s103] sm:$0xff]
    %s105 = sadd.s32 0, 48
    %s106 = scalar_lea.vmem [#allocation2], %s105
    %v107 = vld [vmem:[%s106] sm:$0xff]
    %s108 = sadd.s32 0, 56
    %s109 = scalar_lea.vmem [#allocation2], %s108
    %v110 = vld [vmem:[%s109] sm:$0xff]
    %s111 = sadd.s32 0, 64
    %s112 = scalar_lea.vmem [#allocation2], %s111
    %v113 = vld [vmem:[%s112] sm:$0xff]
    %s114 = sadd.s32 0, 72
    %s115 = scalar_lea.vmem [#allocation2], %s114
    %v116 = vld [vmem:[%s115] sm:$0xff]
    %v117 = vmul.f32 %v104, %v104
    %v118 = vadd.f32 %v81, %v117
    %v119 = vmul.f32 %v107, 0.14285715
    %v120 = vmul.f32 %v110, 0.14285715
    %v121 = vmul.f32 %v113, 0.5
    %v122 = vmul.f32 %v116, 0.5
    %v123 = vsub.f32 %v119, %v121
    %v124 = vsub.f32 %v120, %v122
    %v125 = vadd.f32 %v119, %v121
    %v126 = vadd.f32 %v120, %v122
    %v127 = vmul.f32 %v113, %v116
    %v128 = vmin.f32 %v125, %v69
    %v129 = vmax.f32 %v123, %v67
    %v130 = vsub.f32 %v128, %v129
    %v131 = vmax.f32 %v130, 0.0
    %v132 = vmin.f32 %v126, %v70
    %v133 = vmax.f32 %v124, %v68
    %v134 = vsub.f32 %v132, %v133
    %v135 = vmax.f32 %v134, 0.0
    %v136 = vmul.f32 %v131, %v135
    %v137 = vadd.f32 %v127, %v71
    %v138 = vsub.f32 %v137, %v136
    %v139 = vmul.f32 %v136, %v101
    %v140 = vmul.f32 %v99, %v138
    %vm141 = vcmp.gt.f32.partialorder %v139, %v140
    %v142 = vsel %vm141, %v136, %v99
    %v143 = vsel %vm141, %v138, %v101
    %v144 = vsel %vm141, %v104, %v72
    %v145 = vsel %vm141, %v107, %v74
    %v146 = vsel %vm141, %v110, %v76
    %v147 = vsel %vm141, %v113, %v78
    %v148 = vsel %vm141, %v116, %v80
    %v149 = vsel %vm45, %v143, 1.0
    %v150 = vrcp.pop %v149
    %v151 = vmul.f32 %v142, %v150
    %v152 = vsub.f32 %v145, %v53
    %v153 = vmul.f32 %v152, %v152
    %v154 = vsub.f32 %v146, %v56
    %v155 = vmul.f32 %v154, %v154
    %v156 = vadd.f32 %v153, %v155
    %v157 = vsel %vm45, %v147, 0.0
    %v158 = vrsqrt.pop %v157
    %v159 = vmul.f32 %v158, %v157
    %v160 = vmul.f32 %v159, %v158
    %v161 = vmul.f32 0.5, %v160
    %v162 = vsub.f32 1.5, %v161
    %v163 = vmul.f32 %v158, %v162
    %v164 = vmul.f32 %v157, %v163
    %vm165 = vcmp.eq.f32.partialorder %v157, inf
    %v166 = vsel %vm165, %v157, %v164
    %vm167 = vcmp.eq.f32.partialorder %v157, 0.0
    %v168 = vand.u32 %v157, 2147483648
    %v169 = vsel %vm167, %v168, %v166
    %v170 = vsel %vm45, %v59, 0.0
    %v171 = vrsqrt.pop %v170
    %v172 = vmul.f32 %v171, %v170
    %v173 = vmul.f32 %v172, %v171
    %v174 = vmul.f32 0.5, %v173
    %v175 = vsub.f32 1.5, %v174
    %v176 = vmul.f32 %v171, %v175
    %v177 = vmul.f32 %v170, %v176
    %vm178 = vcmp.eq.f32.partialorder %v170, inf
    %v179 = vsel %vm178, %v170, %v177
    %vm180 = vcmp.eq.f32.partialorder %v170, 0.0
    %v181 = vand.u32 %v170, 2147483648
    %v182 = vsel %vm180, %v181, %v179
    %v183 = vsub.f32 %v169, %v182
    %v184 = vmul.f32 %v183, %v183
    %v185 = vsel %vm45, %v148, 0.0
    %v186 = vrsqrt.pop %v185
    %v187 = vmul.f32 %v186, %v185
    %v188 = vmul.f32 %v187, %v186
    %v189 = vmul.f32 0.5, %v188
    %v190 = vsub.f32 1.5, %v189
    %v191 = vmul.f32 %v186, %v190
    %v192 = vmul.f32 %v185, %v191
    %vm193 = vcmp.eq.f32.partialorder %v185, inf
    %v194 = vsel %vm193, %v185, %v192
    %vm195 = vcmp.eq.f32.partialorder %v185, 0.0
    %v196 = vand.u32 %v185, 2147483648
    %v197 = vsel %vm195, %v196, %v194
    %v198 = vsel %vm45, %v62, 0.0
    %v199 = vrsqrt.pop %v198
    %v200 = vmul.f32 %v199, %v198
    %v201 = vmul.f32 %v200, %v199
    %v202 = vmul.f32 0.5, %v201
    %v203 = vsub.f32 1.5, %v202
    %v204 = vmul.f32 %v199, %v203
    %v205 = vmul.f32 %v198, %v204
    %vm206 = vcmp.eq.f32.partialorder %v198, inf
    %v207 = vsel %vm206, %v198, %v205
    %vm208 = vcmp.eq.f32.partialorder %v198, 0.0
    %v209 = vand.u32 %v198, 2147483648
    %v210 = vsel %vm208, %v209, %v207
    %v211 = vsub.f32 %v197, %v210
    %v212 = vmul.f32 %v211, %v211
    %v213 = vadd.f32 %v184, %v212
    %v214 = vsub.f32 %v144, %v151
    %v215 = vmul.f32 %v214, %v214
    %s216 = sadd.s32 0, 80
    %s217 = scalar_lea.vmem [#allocation2], %s216
    %v218 = vld [vmem:[%s217] sm:$0xff]
    %s219 = scalar_lea.vmem [#allocation5], %s102
    %v220 = vld [vmem:[%s219] sm:$0xff]
    %v221 = vsub.f32 %v218, %v220
    %v222 = vmul.f32 %v221, %v221
    %s223 = sadd.s32 0, 88
    %s224 = scalar_lea.vmem [#allocation2], %s223
    %v225 = vld [vmem:[%s224] sm:$0xff]
    %s226 = scalar_lea.vmem [#allocation5], %s105
    %v227 = vld [vmem:[%s226] sm:$0xff]
    %v228 = vsub.f32 %v225, %v227
    %v229 = vmul.f32 %v228, %v228
    %v230 = vadd.f32 %v222, %v229
    %s231 = sadd.s32 0, 96
    %s232 = scalar_lea.vmem [#allocation2], %s231
    %v233 = vld [vmem:[%s232] sm:$0xff]
    %s234 = scalar_lea.vmem [#allocation5], %s108
    %v235 = vld [vmem:[%s234] sm:$0xff]
    %v236 = vsub.f32 %v233, %v235
    %v237 = vmul.f32 %v236, %v236
    %v238 = vadd.f32 %v230, %v237
    %s239 = sadd.s32 0, 104
    %s240 = scalar_lea.vmem [#allocation2], %s239
    %v241 = vld [vmem:[%s240] sm:$0xff]
    %s242 = scalar_lea.vmem [#allocation5], %s111
    %v243 = vld [vmem:[%s242] sm:$0xff]
    %v244 = vsub.f32 %v241, %v243
    %v245 = vmul.f32 %v244, %v244
    %v246 = vadd.f32 %v238, %v245
    %s247 = sadd.s32 0, 112
    %s248 = scalar_lea.vmem [#allocation2], %s247
    %v249 = vld [vmem:[%s248] sm:$0xff]
    %s250 = scalar_lea.vmem [#allocation5], %s114
    %v251 = vld [vmem:[%s250] sm:$0xff]
    %v252 = vsub.f32 %v249, %v251
    %v253 = vmul.f32 %v252, %v252
    %v254 = vadd.f32 %v246, %v253
    %s255 = sadd.s32 0, 120
    %s256 = scalar_lea.vmem [#allocation2], %s255
    %v257 = vld [vmem:[%s256] sm:$0xff]
    %s258 = scalar_lea.vmem [#allocation5], %s216
    %v259 = vld [vmem:[%s258] sm:$0xff]
    %v260 = vsub.f32 %v257, %v259
    %v261 = vmul.f32 %v260, %v260
    %v262 = vadd.f32 %v254, %v261
    %s263 = sadd.s32 0, 128
    %s264 = scalar_lea.vmem [#allocation2], %s263
    %v265 = vld [vmem:[%s264] sm:$0xff]
    %s266 = scalar_lea.vmem [#allocation5], %s223
    %v267 = vld [vmem:[%s266] sm:$0xff]
    %v268 = vsub.f32 %v265, %v267
    %v269 = vmul.f32 %v268, %v268
    %v270 = vadd.f32 %v262, %v269
    %s271 = sadd.s32 0, 136
    %s272 = scalar_lea.vmem [#allocation2], %s271
    %v273 = vld [vmem:[%s272] sm:$0xff]
    %s274 = scalar_lea.vmem [#allocation5], %s231
    %v275 = vld [vmem:[%s274] sm:$0xff]
    %v276 = vsub.f32 %v273, %v275
    %v277 = vmul.f32 %v276, %v276
    %v278 = vadd.f32 %v270, %v277
    %s279 = sadd.s32 0, 144
    %s280 = scalar_lea.vmem [#allocation2], %s279
    %v281 = vld [vmem:[%s280] sm:$0xff]
    %s282 = scalar_lea.vmem [#allocation5], %s239
    %v283 = vld [vmem:[%s282] sm:$0xff]
    %v284 = vsub.f32 %v281, %v283
    %v285 = vmul.f32 %v284, %v284
    %v286 = vadd.f32 %v278, %v285
    %s287 = sadd.s32 0, 152
    %s288 = scalar_lea.vmem [#allocation2], %s287
    %v289 = vld [vmem:[%s288] sm:$0xff]
    %s290 = scalar_lea.vmem [#allocation5], %s247
    %v291 = vld [vmem:[%s290] sm:$0xff]
    %v292 = vsub.f32 %v289, %v291
    %v293 = vmul.f32 %v292, %v292
    %v294 = vadd.f32 %v286, %v293
    %s295 = sadd.s32 0, 160
    %s296 = scalar_lea.vmem [#allocation2], %s295
    %v297 = vld [vmem:[%s296] sm:$0xff]
    %s298 = scalar_lea.vmem [#allocation5], %s255
    %v299 = vld [vmem:[%s298] sm:$0xff]
    %v300 = vsub.f32 %v297, %v299
    %v301 = vmul.f32 %v300, %v300
    %v302 = vadd.f32 %v294, %v301
    %s303 = sadd.s32 0, 168
    %s304 = scalar_lea.vmem [#allocation2], %s303
    %v305 = vld [vmem:[%s304] sm:$0xff]
    %s306 = scalar_lea.vmem [#allocation5], %s263
    %v307 = vld [vmem:[%s306] sm:$0xff]
    %v308 = vsub.f32 %v305, %v307
    %v309 = vmul.f32 %v308, %v308
    %v310 = vadd.f32 %v302, %v309
    %s311 = sadd.s32 0, 176
    %s312 = scalar_lea.vmem [#allocation2], %s311
    %v313 = vld [vmem:[%s312] sm:$0xff]
    %s314 = scalar_lea.vmem [#allocation5], %s271
    %v315 = vld [vmem:[%s314] sm:$0xff]
    %v316 = vsub.f32 %v313, %v315
    %v317 = vmul.f32 %v316, %v316
    %v318 = vadd.f32 %v310, %v317
    %s319 = sadd.s32 0, 184
    %s320 = scalar_lea.vmem [#allocation2], %s319
    %v321 = vld [vmem:[%s320] sm:$0xff]
    %s322 = scalar_lea.vmem [#allocation5], %s279
    %v323 = vld [vmem:[%s322] sm:$0xff]
    %v324 = vsub.f32 %v321, %v323
    %v325 = vmul.f32 %v324, %v324
    %v326 = vadd.f32 %v318, %v325
    %s327 = sadd.s32 0, 192
    %s328 = scalar_lea.vmem [#allocation2], %s327
    %v329 = vld [vmem:[%s328] sm:$0xff]
    %s330 = scalar_lea.vmem [#allocation5], %s287
    %v331 = vld [vmem:[%s330] sm:$0xff]
    %v332 = vsub.f32 %v329, %v331
    %v333 = vmul.f32 %v332, %v332
    %v334 = vadd.f32 %v326, %v333
    %s335 = sadd.s32 0, 200
    %s336 = scalar_lea.vmem [#allocation2], %s335
    %v337 = vld [vmem:[%s336] sm:$0xff]
    %s338 = scalar_lea.vmem [#allocation5], %s295
    %v339 = vld [vmem:[%s338] sm:$0xff]
    %v340 = vsub.f32 %v337, %v339
    %v341 = vmul.f32 %v340, %v340
    %v342 = vadd.f32 %v334, %v341
    %s343 = sadd.s32 0, 208
    %s344 = scalar_lea.vmem [#allocation2], %s343
    %v345 = vld [vmem:[%s344] sm:$0xff]
    %s346 = scalar_lea.vmem [#allocation5], %s303
    %v347 = vld [vmem:[%s346] sm:$0xff]
    %v348 = vsub.f32 %v345, %v347
    %v349 = vmul.f32 %v348, %v348
    %v350 = vadd.f32 %v342, %v349
    %s351 = sadd.s32 0, 216
    %s352 = scalar_lea.vmem [#allocation2], %s351
    %v353 = vld [vmem:[%s352] sm:$0xff]
    %s354 = scalar_lea.vmem [#allocation5], %s311
    %v355 = vld [vmem:[%s354] sm:$0xff]
    %v356 = vsub.f32 %v353, %v355
    %v357 = vmul.f32 %v356, %v356
    %v358 = vadd.f32 %v350, %v357
    %s359 = sadd.s32 0, 224
    %s360 = scalar_lea.vmem [#allocation2], %s359
    %v361 = vld [vmem:[%s360] sm:$0xff]
    %s362 = scalar_lea.vmem [#allocation5], %s319
    %v363 = vld [vmem:[%s362] sm:$0xff]
    %v364 = vsub.f32 %v361, %v363
    %v365 = vmul.f32 %v364, %v364
    %v366 = vadd.f32 %v358, %v365
    %s367 = sadd.s32 0, 232
    %s368 = scalar_lea.vmem [#allocation2], %s367
    %v369 = vld [vmem:[%s368] sm:$0xff]
    %s370 = scalar_lea.vmem [#allocation5], %s327
    %v371 = vld [vmem:[%s370] sm:$0xff]
    %v372 = vsub.f32 %v369, %v371
    %v373 = vmul.f32 %v372, %v372
    %v374 = vadd.f32 %v366, %v373
    %v375 = vadd.f32 %v156, %v213
    %v376 = vmul.f32 %v375, 5.0
    %v377 = vadd.f32 %v376, %v215
    %v378 = vadd.f32 %v377, %v374
    %v379 = vmul.f32 %v47, %v378
    %v380 = vmul.f32 %v50, 0.5
    %v381 = vmul.f32 %v380, %v118
    %v382 = vadd.f32 %v379, %v381
    %v383 = vadd.f32 %v382, 0.0
    %384 = vst [vmem:[#allocation7] sm:$0xff] %v383
    // Predicated region
    $region18: #{tpu_custom_call.1} parent=1 // pred_check
      _
    $region19: #{tpu_custom_call.1} parent=1 // pred_check_branch
      %386 = sbr.rel (0) target = $region21
    $region20: #{tpu_custom_call.1} parent=1 // pred_region
      %388 = vsyncadd [#allocation4], 0
      %s390 = sshll.u32 [#allocation7], 4
      %s391 = int_to_ptr.vmem [resolvable:$true] %s390
      %s392 = sshll.u32 %s2, 4
      %s393 = int_to_ptr.hbm [resolvable:$true] %s392
      %395 = dma.vmem_to_hbm [thread:$0]  %s391, 128, %s393, [#allocation4]
    $region21: #{tpu_custom_call.1} parent=1 // pred_fallthru
      _
    // Predicated region
    $region22: #{tpu_custom_call.1} parent=1 // pred_check
      _
    $region23: #{tpu_custom_call.1} parent=1 // pred_check_branch
      %397 = sbr.rel (0) target = $region25
    $region24: #{tpu_custom_call.1} parent=1 // pred_region
      %399 = dma.done [#allocation4], 128
    $region25: #{tpu_custom_call.1} parent=1 // pred_fallthru
      _
    %400 = vsyncpa [#allocation3], 1
    %401 = vsyncpa [#allocation6], 1
    %402 = vsyncpa [#allocation4], 1

</llo_original>
